<compile_context>
chip_gen: v6e
topology: v6e:2x2x1
jax: 0.10.0
libtpu: 0.0.40
codegen_flags: <defaults>
</compile_context>

<pallas_src>
import functools

import jax
import jax.numpy as jnp
from jax import lax
from jax.experimental import pallas as pl
from jax.experimental.pallas import tpu as pltpu

_EPS = 1e-5
_NEG_BIG = -1e30


def _round_up(v, m):
    return (v + m - 1) // m * m


def _vmem_capacity_bytes():
    """Best-effort per-core VMEM capacity; conservative fallback (v7x)."""
    try:
        info = pltpu.get_tpu_info()
        cap = getattr(info, "vmem_capacity_bytes", None)
        if cap:
            return int(cap)
    except Exception:
        pass
    return 64 * 1024 * 1024


# ---------------------------------------------------------------------------
# Pass 1: fused batch statistics.  Accumulate sum(x) and the Gram matrix
# G = X^T X.  Rows past the true batch size (tail tile / clamped overshoot
# tile of the core-parallel split) are masked to zero.
# ---------------------------------------------------------------------------
def _stats_kernel(x_ref, sum_ref, gram_ref, *, tile_n, tiles_per_core, n_rows,
                  gram_dtype):
    c = pl.program_id(0)
    i = pl.program_id(1)

    @pl.when(i == 0)
    def _init():
        sum_ref[...] = jnp.zeros_like(sum_ref)
        gram_ref[...] = jnp.zeros_like(gram_ref)

    # Logical (unclamped) row offset of this tile -> mask out-of-batch rows.
    row0 = (c * tiles_per_core + i) * tile_n
    rows = row0 + lax.broadcasted_iota(jnp.int32, (tile_n, 1), 0)
    x = jnp.where(rows < n_rows, x_ref[...].astype(jnp.float32), 0.0)

    sum_ref[...] += jnp.sum(x, axis=0)[None, None, :]
    xg = x.astype(gram_dtype)
    g = lax.dot_general(xg, xg, (((0,), (0,)), ((), ())),
                        preferred_element_type=jnp.float32)
    gram_ref[...] += g[None, :, :]


# ---------------------------------------------------------------------------
# Pass 2: fused forward.  BN1/BN2 pre-folded into (a2, c2); Dropout = identity;
# output feature axis padded to a lane-dense multiple of 128.
# ---------------------------------------------------------------------------
def _forward_kernel(x_ref, a2_ref, c2_ref, w2_ref, b2_ref, o_ref, *, mm_dtype):
    h = jnp.dot(x_ref[...].astype(mm_dtype), a2_ref[...],
                preferred_element_type=jnp.float32)
    h = jnp.maximum(h + c2_ref[...], 0.0)          # BN2 + Dropout(id) + ReLU
    logits = jnp.dot(h.astype(mm_dtype), w2_ref[...],
                     preferred_element_type=jnp.float32) + b2_ref[...]
    m = jnp.max(logits, axis=1, keepdims=True)     # padded lanes hold -1e30
    e = jnp.exp(logits - m)
    o_ref[...] = (e / jnp.sum(e, axis=1, keepdims=True)).astype(o_ref.dtype)


def classifier_forward(x, params, *, tile_n=None, matmul_dtype=jnp.bfloat16,
                       stats_matmul_dtype=jnp.float32, out_dtype=jnp.float32,
                       eps=_EPS):
    """x: (N, indim) float32. Returns (N, outdim) softmax probabilities."""
    n, indim = x.shape
    w1, b1 = params["w1"], params["b1"]
    w2, b2 = params["w2"], params["b2"]
    gamma1, beta1 = params["gamma1"], params["beta1"]
    gamma2, beta2 = params["gamma2"], params["beta2"]
    hidden = w1.shape[1]
    outdim = w2.shape[1]

    # Lane-dense internal feature widths (multiple of 128).  indim stays as
    # stored (padding it would force an extra HBM copy of x).
    hid_p = _round_up(hidden, 128)
    out_p = _round_up(outdim, 128)

    mm_bytes = jnp.dtype(matmul_dtype).itemsize
    x_bytes = jnp.dtype(x.dtype).itemsize
    o_bytes = jnp.dtype(out_dtype).itemsize

    # --- VMEM budget: resident weight/accumulator blocks (assume double
    # buffered, even though their block index never changes) + the double
    # buffered streamed batch tiles of x and the output. ---
    const_bytes = 2 * (indim * hid_p * mm_bytes        # a2
                       + hid_p * 4                     # c2
                       + hid_p * out_p * mm_bytes      # w2 (padded)
                       + out_p * 4                     # b2 (padded)
                       + indim * indim * 4             # Gram accumulator
                       + indim * 4)                    # sum accumulator
    row_bytes = 2 * (indim * x_bytes + out_p * o_bytes)
    vmem_cap = _vmem_capacity_bytes()
    budget = int(vmem_cap * 0.7)
    headroom = 2 * 1024 * 1024

    if tile_n is None:
        avail = max(budget - const_bytes - headroom, 8 * row_bytes)
        tile_n = avail // row_bytes
    tile_n = max(8, min(int(tile_n), 4096, _round_up(n, 8)))
    tile_n = (tile_n // 8) * 8

    vmem_limit = int(min(max(const_bytes + tile_n * row_bytes + headroom,
                             16 * 1024 * 1024),
                         int(vmem_cap * 0.9)))

    num_tiles = pl.cdiv(n, tile_n)
    n_split = 2 if num_tiles >= 2 else 1   # v7x megacore split; serial elsewhere
    tiles_per_core = pl.cdiv(num_tiles, n_split)

    # ---------------- pass 1: fused batch statistics ----------------
    def stats_x_map(c, i):
        t = c * tiles_per_core + i
        return (jnp.minimum(t, num_tiles - 1), 0)   # clamp overshoot tiles

    sum_parts, gram_parts = pl.pallas_call(
        functools.partial(_stats_kernel, tile_n=tile_n,
                          tiles_per_core=tiles_per_core, n_rows=n,
                          gram_dtype=stats_matmul_dtype),
        out_shape=(jax.ShapeDtypeStruct((n_split, 1, indim), jnp.float32),
                   jax.ShapeDtypeStruct((n_split, indim, indim), jnp.float32)),
        grid_spec=pltpu.PrefetchScalarGridSpec(
            num_scalar_prefetch=0,
            grid=(n_split, tiles_per_core),
            in_specs=[pl.BlockSpec((tile_n, indim), stats_x_map)],
            out_specs=[pl.BlockSpec((1, 1, indim), lambda c, i: (c, 0, 0)),
                       pl.BlockSpec((1, indim, indim), lambda c, i: (c, 0, 0))]),
        compiler_params=pltpu.CompilerParams(
            dimension_semantics=("parallel", "arbitrary"),
            vmem_limit_bytes=vmem_limit),
    )(x)

    sum_x = jnp.sum(sum_parts[:, 0, :], axis=0, keepdims=True)   # (1, indim)
    gram = jnp.sum(gram_parts, axis=0)                           # (indim, indim)

    # ---- fold BN1 into Linear-1 (tiny host-side XLA math) ----
    inv_n = 1.0 / float(n)
    mean_x = sum_x * inv_n
    var_x = jnp.maximum(jnp.diagonal(gram)[None, :] * inv_n - mean_x * mean_x,
                        0.0)                                     # biased var
    s1 = gamma1 * lax.rsqrt(var_x + eps)                         # (1, indim)
    t1 = beta1 - mean_x * s1

    # Pad hidden to a lane-dense width.  Padded columns stay exact zeros all
    # the way through (a2 = 0, c2 = 0, w2 rows = 0) so results are unchanged.
    w1_p = jnp.zeros((indim, hid_p), jnp.float32).at[:, :hidden].set(w1)
    b1_p = jnp.zeros((1, hid_p), jnp.float32).at[:, :hidden].set(b1)
    g2_p = jnp.zeros((1, hid_p), jnp.float32).at[:, :hidden].set(gamma2)
    be2_p = jnp.zeros((1, hid_p), jnp.float32).at[:, :hidden].set(beta2)

    a_mat = w1_p * jnp.reshape(s1, (indim, 1))                   # (indim, hid_p)
    c_vec = t1 @ w1_p + b1_p                                     # (1, hid_p)

    # ---- BN2 batch stats derived from (sum_x, Gram) ----
    sum_z = sum_x @ a_mat                                        # (1, hid_p)
    ssq_z = jnp.sum(a_mat * (gram @ a_mat), axis=0, keepdims=True)
    mean_z = sum_z * inv_n
    var_z = jnp.maximum(ssq_z * inv_n - mean_z * mean_z, 0.0)    # shift-invar.
    mean_h = mean_z + c_vec
    s2 = g2_p * lax.rsqrt(var_z + eps)
    t2 = be2_p - mean_h * s2
    a2 = (a_mat * s2).astype(matmul_dtype)                       # BN1+BN2 in W1
    c2 = c_vec * s2 + t2                                         # (1, hid_p) f32

    # Lane-dense second Linear: padded columns have zero weights and -1e30
    # bias so the padded logits vanish under softmax.
    w2_p = (jnp.zeros((hid_p, out_p), jnp.float32)
            .at[:hidden, :outdim].set(w2).astype(matmul_dtype))
    b2_p = jnp.full((1, out_p), _NEG_BIG, jnp.float32).at[:, :outdim].set(b2)

    # ---------------- pass 2: fused forward ----------------
    out_padded = pl.pallas_call(
        functools.partial(_forward_kernel, mm_dtype=matmul_dtype),
        out_shape=jax.ShapeDtypeStruct((n, out_p), out_dtype),
        grid_spec=pltpu.PrefetchScalarGridSpec(
            num_scalar_prefetch=0,
            grid=(num_tiles,),
            in_specs=[pl.BlockSpec((tile_n, indim), lambda i: (i, 0)),
                      pl.BlockSpec((indim, hid_p), lambda i: (0, 0)),
                      pl.BlockSpec((1, hid_p), lambda i: (0, 0)),
                      pl.BlockSpec((hid_p, out_p), lambda i: (0, 0)),
                      pl.BlockSpec((1, out_p), lambda i: (0, 0))],
            out_specs=pl.BlockSpec((tile_n, out_p), lambda i: (i, 0))),
        compiler_params=pltpu.CompilerParams(
            dimension_semantics=("parallel",),
            vmem_limit_bytes=vmem_limit),
    )(x, a2, c2, w2_p, b2_p)

    return out_padded[:, :outdim]


def init_params(key, indim, outdim):
    hidden = (indim + outdim) * 2 // 3
    ks = jax.random.split(key, 8)
    bound1 = 1.0 / float(indim) ** 0.5
    bound2 = 1.0 / float(hidden) ** 0.5
    return {
        # BatchNorm affine params (non-trivial values to exercise the folding)
        "gamma1": jax.random.uniform(ks[0], (1, indim), jnp.float32, 0.5, 1.5),
        "beta1": 0.1 * jax.random.normal(ks[1], (1, indim), jnp.float32),
        # Linear 1 stored pre-transposed as (indim, hidden) == W^T
        "w1": jax.random.uniform(ks[2], (indim, hidden), jnp.float32, -bound1, bound1),
        "b1": jax.random.uniform(ks[3], (1, hidden), jnp.float32, -bound1, bound1),
        "gamma2": jax.random.uniform(ks[4], (1, hidden), jnp.float32, 0.5, 1.5),
        "beta2": 0.1 * jax.random.normal(ks[5], (1, hidden), jnp.float32),
        # Linear 2 stored pre-transposed as (hidden, outdim) == W^T
        "w2": jax.random.uniform(ks[6], (hidden, outdim), jnp.float32, -bound2, bound2),
        "b2": jax.random.uniform(ks[7], (1, outdim), jnp.float32, -bound2, bound2),
    }


def reference_forward(x, params, eps=_EPS):
    """Pure-JAX mirror of Classifier.forward (eval mode, batch-stat BatchNorm)."""
    g1, be1 = params["gamma1"], params["beta1"]
    g2, be2 = params["gamma2"], params["beta2"]
    w1, b1, w2, b2 = params["w1"], params["b1"], params["w2"], params["b2"]

    m1 = jnp.mean(x, axis=0, keepdims=True)
    v1 = jnp.mean((x - m1) ** 2, axis=0, keepdims=True)
    xn = (x - m1) / jnp.sqrt(v1 + eps) * g1 + be1
    h = xn @ w1 + b1
    m2 = jnp.mean(h, axis=0, keepdims=True)
    v2 = jnp.mean((h - m2) ** 2, axis=0, keepdims=True)
    hn = (h - m2) / jnp.sqrt(v2 + eps) * g2 + be2
    hn = jnp.maximum(hn, 0.0)
    logits = hn @ w2 + b2
    return jax.nn.softmax(logits, axis=1)


if __name__ == "__main__":
    key = jax.random.PRNGKey(0)
    kx, kp = jax.random.split(key)

    batch, indim, outdim = 200, 16, 8          # hidden = (16 + 8) * 2 // 3 = 16
    x = jax.random.normal(kx, (batch, indim), jnp.float32)
    params = init_params(kp, indim, outdim)

    ref = reference_forward(x, params)

    # tile_n=64: 4 batch tiles, split 2x2 across the core-parallel stats grid,
    # with a masked tail tile (200 % 64 != 0).
    out_f32 = jax.block_until_ready(
        classifier_forward(x, params, tile_n=64, matmul_dtype=jnp.float32))
    # tile_n=80: 3 tiles -> odd tile count exercises the clamped overshoot
    # tile on the second core-parallel slice plus a masked tail tile.
    out_bf16 = jax.block_until_ready(
        classifier_forward(x, params, tile_n=80, matmul_dtype=jnp.bfloat16))
    # Auto tile sizing (whole batch fits a single tile at these shapes).
    out_auto = jax.block_until_ready(classifier_forward(x, params))

    for out in (out_f32, out_bf16, out_auto):
        assert out.shape == (batch, outdim)
        assert bool(jnp.all(jnp.isfinite(out)))
        # Exact softmax: rows sum to 1 over the real classes.
        assert jnp.allclose(jnp.sum(out, axis=1), 1.0, atol=1e-4)

    assert jnp.allclose(out_f32, ref, atol=5e-3), \
        float(jnp.max(jnp.abs(out_f32 - ref)))
    assert jnp.allclose(out_bf16, ref, atol=8e-2), \
        float(jnp.max(jnp.abs(out_bf16 - ref)))
    assert jnp.allclose(out_auto, ref, atol=8e-2), \
        float(jnp.max(jnp.abs(out_auto - ref)))
    print("KERNEL_OK")
</pallas_src>

<mosaic_0001>
module attributes {stable_mosaic.version = 11 : i64} {
  func.func @_stats_kernel(%arg0: i32, %arg1: i32, %arg2: memref<64x16xf32, #tpu.memory_space<vmem>>, %arg3: memref<1x1x16xf32, #tpu.memory_space<vmem>>, %arg4: memref<1x16x16xf32, #tpu.memory_space<vmem>>) attributes {dimension_semantics = [#tpu.dimension_semantics<parallel>, #tpu.dimension_semantics<arbitrary>], iteration_bounds = array<i64: 2, 2>, scalar_prefetch = 0 : i64, scratch_operands = 0 : i64, tpu.core_type = #tpu.core_type<tc>, window_params = [{transform_indices = @transform_0, window_bounds = array<i64: 64, 16>}, {transform_indices = @transform_1, window_bounds = array<i64: 1, 1, 16>}, {transform_indices = @transform_2, window_bounds = array<i64: 1, 16, 16>}]} {
    %c0_i32 = arith.constant 0 : i32
    %0 = arith.cmpi eq, %arg1, %c0_i32 : i32
    %1 = arith.extui %0 : i1 to i32
    %c0_i32_0 = arith.constant 0 : i32
    %2 = arith.cmpi ne, %1, %c0_i32_0 : i32
    scf.if %2 {
      %cst_16 = arith.constant 0.000000e+00 : f32
      %26 = vector.broadcast %cst_16 : f32 to vector<1x1x16xf32>
      %c0_17 = arith.constant 0 : index
      %c0_18 = arith.constant 0 : index
      %c0_19 = arith.constant 0 : index
      %27 = vector.load %arg3[%c0_17, %c0_18, %c0_19] : memref<1x1x16xf32, #tpu.memory_space<vmem>>, vector<1x1x16xf32>
      tpu.vector_store %arg3[%c0_17, %c0_18, %c0_19], %26 {strides = array<i32>} : memref<1x1x16xf32, #tpu.memory_space<vmem>>, vector<1x1x16xf32>,
      %cst_20 = arith.constant 0.000000e+00 : f32
      %28 = vector.broadcast %cst_20 : f32 to vector<1x16x16xf32>
      %c0_21 = arith.constant 0 : index
      %c0_22 = arith.constant 0 : index
      %c0_23 = arith.constant 0 : index
      %29 = vector.load %arg4[%c0_21, %c0_22, %c0_23] : memref<1x16x16xf32, #tpu.memory_space<vmem>>, vector<1x16x16xf32>
      tpu.vector_store %arg4[%c0_21, %c0_22, %c0_23], %28 {strides = array<i32>} : memref<1x16x16xf32, #tpu.memory_space<vmem>>, vector<1x16x16xf32>,
    } else {
    }
    %c2_i32 = arith.constant 2 : i32
    %3 = arith.muli %arg0, %c2_i32 : i32
    %4 = arith.addi %3, %arg1 : i32
    %c64_i32 = arith.constant 64 : i32
    %5 = arith.muli %4, %c64_i32 : i32
    %6 = tpu.iota {dimensions = array<i32: 0>} : vector<64x1xi32>
    %7 = vector.broadcast %5 : i32 to vector<64x1xi32>
    %8 = arith.addi %7, %6 : vector<64x1xi32>
    %c200_i32 = arith.constant 200 : i32
    %9 = vector.broadcast %c200_i32 : i32 to vector<64x1xi32>
    %10 = arith.cmpi slt, %8, %9 : vector<64x1xi32>
    %c0 = arith.constant 0 : index
    %c0_1 = arith.constant 0 : index
    %11 = vector.load %arg2[%c0, %c0_1] : memref<64x16xf32, #tpu.memory_space<vmem>>, vector<64x16xf32>
    %cst = arith.constant 0.000000e+00 : f32
    %12 = vector.shape_cast %10 : vector<64x1xi1> to vector<64x1xi1>
    %13 = vector.broadcast %12 : vector<64x1xi1> to vector<64x16xi1>
    %14 = vector.broadcast %cst : f32 to vector<64x16xf32>
    %15 = arith.select %13, %11, %14 : vector<64x16xi1>, vector<64x16xf32>
    %c0_2 = arith.constant 0 : index
    %c0_3 = arith.constant 0 : index
    %c0_4 = arith.constant 0 : index
    %16 = vector.load %arg3[%c0_2, %c0_3, %c0_4] : memref<1x1x16xf32, #tpu.memory_space<vmem>>, vector<1x1x16xf32>
    %cst_5 = arith.constant dense<0.000000e+00> : vector<16xf32>
    %17 = vector.multi_reduction <add>, %15, %cst_5 [0] : vector<64x16xf32> to vector<16xf32>
    %18 = vector.shape_cast %17 : vector<16xf32> to vector<1x1x16xf32>
    %19 = arith.addf %16, %18 : vector<1x1x16xf32>
    %c0_6 = arith.constant 0 : index
    %c0_7 = arith.constant 0 : index
    %c0_8 = arith.constant 0 : index
    %20 = vector.load %arg3[%c0_6, %c0_7, %c0_8] : memref<1x1x16xf32, #tpu.memory_space<vmem>>, vector<1x1x16xf32>
    tpu.vector_store %arg3[%c0_6, %c0_7, %c0_8], %19 {strides = array<i32>} : memref<1x1x16xf32, #tpu.memory_space<vmem>>, vector<1x1x16xf32>,
    %cst_9 = arith.constant dense<0.000000e+00> : vector<16x16xf32>
    %21 = tpu.matmul %15, %15, %cst_9 {dimension_numbers = #tpu.dot_dimension_numbers<[0], [0], [1], [1], [0, 1, 1, 1], [], []>} : vector<64x16xf32>, vector<64x16xf32>, vector<16x16xf32> -> vector<16x16xf32>
    %c0_10 = arith.constant 0 : index
    %c0_11 = arith.constant 0 : index
    %c0_12 = arith.constant 0 : index
    %22 = vector.load %arg4[%c0_10, %c0_11, %c0_12] : memref<1x16x16xf32, #tpu.memory_space<vmem>>, vector<1x16x16xf32>
    %23 = vector.shape_cast %21 : vector<16x16xf32> to vector<1x16x16xf32>
    %24 = arith.addf %22, %23 : vector<1x16x16xf32>
    %c0_13 = arith.constant 0 : index
    %c0_14 = arith.constant 0 : index
    %c0_15 = arith.constant 0 : index
    %25 = vector.load %arg4[%c0_13, %c0_14, %c0_15] : memref<1x16x16xf32, #tpu.memory_space<vmem>>, vector<1x16x16xf32>
    tpu.vector_store %arg4[%c0_13, %c0_14, %c0_15], %24 {strides = array<i32>} : memref<1x16x16xf32, #tpu.memory_space<vmem>>, vector<1x16x16xf32>,
    return
  }
  func.func @transform_0(%arg0: i32, %arg1: i32) -> (i32, i32) {
    %c2_i32 = arith.constant 2 : i32
    %0 = arith.muli %arg0, %c2_i32 : i32
    %1 = arith.addi %0, %arg1 : i32
    %c3_i32 = arith.constant 3 : i32
    %2 = arith.minsi %1, %c3_i32 : i32
    %c0_i32 = arith.constant 0 : i32
    %c0_i32_0 = arith.constant 0 : i32
    return %2, %c0_i32 : i32, i32
  }
  func.func @transform_1(%arg0: i32, %arg1: i32) -> (i32, i32, i32) {
    %c0_i32 = arith.constant 0 : i32
    %c0_i32_0 = arith.constant 0 : i32
    %c0_i32_1 = arith.constant 0 : i32
    return %arg0, %c0_i32, %c0_i32_0 : i32, i32, i32
  }
  func.func @transform_2(%arg0: i32, %arg1: i32) -> (i32, i32, i32) {
    %c0_i32 = arith.constant 0 : i32
    %c0_i32_0 = arith.constant 0 : i32
    %c0_i32_1 = arith.constant 0 : i32
    return %arg0, %c0_i32, %c0_i32_0 : i32, i32, i32
  }
}

</mosaic_0001>

<llo_original>
// kernel: tpu_custom_call.1
$region0: #{tpu_custom_call.1}
  #allocation0 [shape = 'u32[]', space=smem, size = 0x4, offset = 0x4, fixed_abs, tag = 'smem constant byte address 0x4 - core index']
  #allocation1 [shape = 'u32[144,128]{1,0:T(1,128)}', space=vmem, size = 0x12000, scoped, tag = 'internal scratch']
  %s0 = inlined_call_operand.vmem [shape: f32[200,16], index: 0, kind: input, shape index: {}]
  %s1 = inlined_call_operand.hbm [shape: f32[2,1,16], index: 1, kind: output, shape index: {0}]
  %s2 = inlined_call_operand.hbm [shape: f32[2,16,16], index: 2, kind: output, shape index: {1}]
  %3 = xla_tuple %s1, %s2
  %s4 = sld [smem:[#allocation0]]
  $region49: #{tpu_custom_call.1} parent=0
    _
  %s6 = ssub.s32 1, %s4
  %s7 = scalar_select 0, %s6, %s4
  $region1: #{tpu_custom_call.1} parent=0
    #allocation2 [shape = 'u8[1024]{0}', space=vmem, size = 0x400, scoped, tag = 'output window, operand 0']
    #allocation3 [shape = 's32[2]{0}', space=sflag, size = 0x8, scoped, tag = 'scoped memory for tpu_custom_call.1']
    #allocation4 [shape = 'u8[16384]{0}', space=vmem, size = 0x4000, scoped, tag = 'output window, operand 1']
    #allocation5 [shape = 's32[2]{0}', space=sflag, size = 0x8, scoped, tag = 'scoped memory for tpu_custom_call.1']
    %8 = vsyncpa [#allocation3], 0
    %s9 = scalar_lea.sflag [#allocation3], 1
    %10 = vsyncpa %s9, 0
    %11 = vsyncpa [#allocation5], 0
    %s12 = scalar_lea.sflag [#allocation5], 1
    %13 = vsyncpa %s12, 0
    loop: start=0, step=1, limit=6
    $region2: #{tpu_custom_call.1} parent=1 // loop_pre_header
      _
    $region3: #{tpu_custom_call.1} parent=1 // loop_header
      %s15 = sphi 0, %s19
      %p16 = scmp.ge.s32.totalorder %s15, 6
      %s22 = sphi 0, %s34
      %s23 = sphi 0, %s30
      %s24 = sphi 0, %s22
      %s25 = sphi 0, %s23
      %s26 = sphi 0, %s24
      %s27 = sphi 0, %s25
      %s45 = sphi 0, %s47
      %s48 = sphi 0, %s45
      %s49 = sphi 0, %s48
      %s65 = sphi 0, %s49
      %s71 = sphi 0, %s73
      %s74 = sphi 0, %s71
      %s75 = sphi 0, %s74
      %s91 = sphi 0, %s75
      %s97 = sphi 0, %s99
      %s100 = sphi 0, %s97
      %s101 = sphi 0, %s100
      %s117 = sphi 0, %s101
    $region4: #{tpu_custom_call.1} parent=1 // loop_header_branch
      %18 = sbr.rel (%p16) target = $region8
    $region5: #{tpu_custom_call.1} parent=1 // loop_body
      %s20 = ssub.s32 %s15, 1
      %s21 = ssub.s32 %s15, 2
      %s28 = sadd.s32 1, %s23
      %p29 = scmp.ge.s32.totalorder %s28, 2
      %s30 = scalar_select %p29, 0, %s28
      %s31 = sadd.s32 1, %s22
      %s32 = scalar_select %p29, %s31, %s22
      %p33 = scmp.ge.s32.totalorder %s32, 2
      %s34 = scalar_select %p33, 0, %s32
      %s35 = smul.u32 %s22, 2
      %s36 = sadd.s32 %s35, %s23
      %p37 = scmp.lt.s32.totalorder %s36, 3
      %s38 = scalar_select %p37, %s36, 3
      %s39 = smul.u32 %s34, 2
      %s40 = sadd.s32 %s39, %s30
      %p41 = scmp.lt.s32.totalorder %s40, 3
      %s42 = scalar_select %p41, %s40, 3
      %s43 = ssub.s32 %s38, %s42
      %p44 = scmp.eq.s32.totalorder %s43, 0
      %s46 = sadd.s32 %s45, 1
      %s47 = scalar_select %p44, %s45, %s46
      %p50 = pneg %p44
      %p51 = scmp.eq.s32.totalorder %s15, 3
      %p52 = por %p50, %p51
      %p53 = scmp.ne.s32.totalorder %s45, %s48
      %p54 = scmp.eq.s32.totalorder %s15, 0
      %p55 = por %p53, %p54
      %p56 = scmp.ne.s32.totalorder %s45, %s48
      %p57 = scmp.eq.s32.totalorder %s20, 3
      %p58 = por %p56, %p57
      %p59 = scmp.ne.s32.totalorder %s48, %s49
      %p60 = scmp.eq.s32.totalorder %s20, 0
      %p61 = por %p59, %p60
      %p62 = scmp.ne.s32.totalorder %s48, %s49
      %p63 = scmp.eq.s32.totalorder %s21, 3
      %p64 = por %p62, %p63
      %p66 = scmp.ne.s32.totalorder %s49, %s65
      %p67 = scmp.eq.s32.totalorder %s21, 0
      %p68 = por %p66, %p67
      %s69 = ssub.s32 %s22, %s34
      %p70 = scmp.eq.s32.totalorder %s69, 0
      %s72 = sadd.s32 %s71, 1
      %s73 = scalar_select %p70, %s71, %s72
      %p76 = pneg %p70
      %p77 = scmp.eq.s32.totalorder %s15, 3
      %p78 = por %p76, %p77
      %p79 = scmp.ne.s32.totalorder %s71, %s74
      %p80 = scmp.eq.s32.totalorder %s15, 0
      %p81 = por %p79, %p80
      %p82 = scmp.ne.s32.totalorder %s71, %s74
      %p83 = scmp.eq.s32.totalorder %s20, 3
      %p84 = por %p82, %p83
      %p85 = scmp.ne.s32.totalorder %s74, %s75
      %p86 = scmp.eq.s32.totalorder %s20, 0
      %p87 = por %p85, %p86
      %p88 = scmp.ne.s32.totalorder %s74, %s75
      %p89 = scmp.eq.s32.totalorder %s21, 3
      %p90 = por %p88, %p89
      %p92 = scmp.ne.s32.totalorder %s75, %s91
      %p93 = scmp.eq.s32.totalorder %s21, 0
      %p94 = por %p92, %p93
      %s95 = ssub.s32 %s22, %s34
      %p96 = scmp.eq.s32.totalorder %s95, 0
      %s98 = sadd.s32 %s97, 1
      %s99 = scalar_select %p96, %s97, %s98
      %p102 = pneg %p96
      %p103 = scmp.eq.s32.totalorder %s15, 3
      %p104 = por %p102, %p103
      %p105 = scmp.ne.s32.totalorder %s97, %s100
      %p106 = scmp.eq.s32.totalorder %s15, 0
      %p107 = por %p105, %p106
      %p108 = scmp.ne.s32.totalorder %s97, %s100
      %p109 = scmp.eq.s32.totalorder %s20, 3
      %p110 = por %p108, %p109
      %p111 = scmp.ne.s32.totalorder %s100, %s101
      %p112 = scmp.eq.s32.totalorder %s20, 0
      %p113 = por %p111, %p112
      %p114 = scmp.ne.s32.totalorder %s100, %s101
      %p115 = scmp.eq.s32.totalorder %s21, 3
      %p116 = por %p114, %p115
      %p118 = scmp.ne.s32.totalorder %s101, %s117
      %p119 = scmp.eq.s32.totalorder %s21, 0
      %p120 = por %p118, %p119
      %p121 = scmp.le.s32.totalorder 1, %s15
      %p122 = scmp.lt.s32.totalorder %s15, 5
      %p123 = pnand %p121, %p122
      %p124 = pneg %p123
      // Predicated region
      $region9: #{tpu_custom_call.1} parent=5 // pred_check
        _
      $region10: #{tpu_custom_call.1} parent=5 // pred_check_branch
        %126 = sbr.rel (%p123) target = $region12
      $region11: #{tpu_custom_call.1} parent=5 // pred_region
        %s127 = ssub.s32 %s15, 1
      $region12: #{tpu_custom_call.1} parent=5 // pred_fallthru
        _
      %p128 = scmp.lt.s32.totalorder %s15, 4
      // Predicated region
      $region13: #{tpu_custom_call.1} parent=5 // pred_check
        %p129 = pneg %p128
      $region14: #{tpu_custom_call.1} parent=5 // pred_check_branch
        %131 = sbr.rel (%p129) target = $region16
      $region15: #{tpu_custom_call.1} parent=5 // pred_region
        // Predicated region
        $region17: #{tpu_custom_call.1} parent=15 // pred_check
          %p132 = pneg %p55
        $region18: #{tpu_custom_call.1} parent=15 // pred_check_branch
          %134 = sbr.rel (%p132) target = $region20
        $region19: #{tpu_custom_call.1} parent=15 // pred_region
          %s135 = smul.u32 %s22, 2
          %s136 = sadd.s32 %s135, %s23
          %p137 = scmp.lt.s32.totalorder %s136, 3
          %s138 = scalar_select %p137, %s136, 3
          %s139 = smul.u32 8, %s138
          %s140 = ssub.s32 25, %s139
          %p141 = scmp.lt.s32.totalorder %s140, 8
          %s142 = scalar_select %p141, %s140, 8
          %s143 = smul.u32 128, %s142
          %p144 = scmp.lt.s32.totalorder %s139, 24
          %s145 = scalar_select %p144, %s139, 24
          %s146 = smul.addr %s145, 8
          %s147 = scalar_lea.vmem %s0, %s146
          %s148 = smul.u32 %s22, 2
          %s149 = sadd.s32 %s148, %s23
          %p150 = scmp.lt.s32.totalorder %s149, 3
          %s151 = scalar_select %p150, %s149, 3
          %s152 = smul.u32 8, %s151
          %s153 = ssub.s32 25, %s152
          %p154 = scmp.lt.s32.totalorder %s153, 8
          %s155 = scalar_select %p154, %s153, 8
          %s156 = smul.u32 128, %s155
        $region20: #{tpu_custom_call.1} parent=15 // pred_fallthru
          _
      $region16: #{tpu_custom_call.1} parent=5 // pred_fallthru
        _
      %p157 = scmp.le.s32.totalorder 1, %s15
      %p158 = scmp.lt.s32.totalorder %s15, 5
      %p159 = pnand %p157, %p158
      %p160 = pneg %p159
      // Predicated region
      $region21: #{tpu_custom_call.1} parent=5 // pred_check
        _
      $region22: #{tpu_custom_call.1} parent=5 // pred_check_branch
        %162 = sbr.rel (%p159) target = $region24
      $region23: #{tpu_custom_call.1} parent=5 // pred_region
        %s163 = ssub.s32 %s15, 1
        %s164 = smul.u32 %s24, 2
        %s165 = sadd.s32 %s164, %s25
        %p166 = scmp.lt.s32.totalorder %s165, 3
        %s167 = scalar_select %p166, %s165, 3
        %s168 = smul.u32 8, %s167
        %s169 = ssub.s32 25, %s168
        %p170 = scmp.lt.s32.totalorder %s169, 8
        %s171 = scalar_select %p170, %s169, 8
        %s172 = smul.u32 128, %s171
        %p173 = scmp.lt.s32.totalorder %s168, 24
        %s174 = scalar_select %p173, %s168, 24
        %s175 = smul.addr %s174, 8
        %s176 = scalar_lea.vmem %s0, %s175
        %p177 = pneg %p61
        %p178 = pneg %p58
        %p179 = pneg %p87
        %p180 = pneg %p84
        %s181 = sand.u32 %s74, 1
        %s182 = scalar_lea.sflag [#allocation3], %s181
        %s183 = sand.u32 %s74, 1
        %s184 = scalar_lea.vmem [#allocation2], %s183
        %p185 = pneg %p113
        %p186 = pneg %p110
        %s187 = sand.u32 %s100, 1
        %s188 = scalar_lea.sflag [#allocation5], %s187
        %s189 = sand.u32 %s100, 1
        %s190 = smul.addr %s189, 16
        %s191 = scalar_lea.vmem [#allocation4], %s190
        %s192 = smul.u32 %s24, 2
        %s193 = sadd.s32 %s192, %s25
        %p194 = scmp.lt.s32.totalorder %s193, 3
        %s195 = scalar_select %p194, %s193, 3
        %s196 = smul.u32 8, %s195
        %s197 = ssub.s32 25, %s196
        %p198 = scmp.lt.s32.totalorder %s197, 8
        %s199 = scalar_select %p198, %s197, 8
        %s200 = smul.u32 128, %s199
        %p201 = scmp.lt.s32.totalorder %s196, 24
        %s202 = scalar_select %p201, %s196, 24
        %s203 = smul.addr %s202, 8
        %s204 = scalar_lea.vmem %s0, %s203
        %s205 = smul.u32 %s24, 2
        %s206 = sadd.s32 %s205, %s25
        %p207 = scmp.lt.s32.totalorder %s206, 3
        %s208 = scalar_select %p207, %s206, 3
        %s209 = smul.u32 8, %s208
        %s210 = ssub.s32 25, %s209
        %p211 = scmp.lt.s32.totalorder %s210, 8
        %s212 = scalar_select %p211, %s210, 8
        %s213 = smul.u32 128, %s212
        %p214 = scmp.eq.s32.totalorder %s25, 0
        // Predicated region
        $region25: #{tpu_custom_call.1} parent=23 // pred_check
          %p215 = pneg %p214
        $region26: #{tpu_custom_call.1} parent=23 // pred_check_branch
          %217 = sbr.rel (%p215) target = $region28
        $region27: #{tpu_custom_call.1} parent=23 // pred_region
          %vm218 = vcmask 122880
          %219 = vst.msk [vmem:[%s184] sm:$0x1] %vm218, 0.0
          %vm220 = vcmask 130048
          %221 = vst.msk [vmem:[%s191] sm:$0xff] %vm220, 0.0
          %222 = vst.msk [vmem:[%s191 + $0x8] sm:$0xff] %vm220, 0.0
        $region28: #{tpu_custom_call.1} parent=23 // pred_fallthru
          _
        %s223 = smul.u32 %s24, 2
        %s224 = sadd.s32 %s223, %s25
        %s225 = smul.u32 %s224, 64
        %v226 = vlaneseq
        %v227 = vshrl.u32 %v226, 7
        %v228 = vadd.s32 %v227, 8
        %v229 = vadd.s32 %v227, 16
        %v230 = vadd.s32 %v227, 24
        %v231 = vadd.s32 %v227, 32
        %v232 = vadd.s32 %v227, 40
        %v233 = vadd.s32 %v227, 48
        %v234 = vadd.s32 %v227, 56
        %v235 = vstv %s225
        %v236 = vadd.s32 %v235, %v227
        %v237 = vadd.s32 %v235, %v228
        %v238 = vadd.s32 %v235, %v229
        %v239 = vadd.s32 %v235, %v230
        %v240 = vadd.s32 %v235, %v231
        %v241 = vadd.s32 %v235, %v232
        %v242 = vadd.s32 %v235, %v233
        %v243 = vadd.s32 %v235, %v234
        %vm244 = vcmp.lt.s32.totalorder %v236, 200
        %vm245 = vcmp.lt.s32.totalorder %v237, 200
        %vm246 = vcmp.lt.s32.totalorder %v238, 200
        %vm247 = vcmp.lt.s32.totalorder %v239, 200
        %vm248 = vcmp.lt.s32.totalorder %v240, 200
        %vm249 = vcmp.lt.s32.totalorder %v241, 200
        %vm250 = vcmp.lt.s32.totalorder %v242, 200
        %vm251 = vcmp.lt.s32.totalorder %v243, 200
        %v252 = vld [vmem:[%s204] sm:$0xff]
        %v253 = vld [vmem:[%s204 + $0x8] sm:$0xff]
        %v254 = vld [vmem:[%s204 + $0x10] sm:$0xff]
        %v255 = vld [vmem:[%s204 + $0x18] sm:$0xff]
        %v256 = vld [vmem:[%s204 + $0x20] sm:$0xff]
        %v257 = vld [vmem:[%s204 + $0x28] sm:$0xff]
        %v258 = vld [vmem:[%s204 + $0x30] sm:$0xff]
        %v259 = vld [vmem:[%s204 + $0x38] sm:$0xff]
        %v260 = vsel %vm244, 1, 0
        %v261 = vsel %vm245, 1, 0
        %v262 = vsel %vm246, 1, 0
        %v263 = vsel %vm247, 1, 0
        %v264 = vsel %vm248, 1, 0
        %v265 = vsel %vm249, 1, 0
        %v266 = vsel %vm250, 1, 0
        %v267 = vsel %vm251, 1, 0
        %vm268 = vcmp.eq.s32.totalorder %v260, 1
        %vm269 = vcmp.eq.s32.totalorder %v261, 1
        %vm270 = vcmp.eq.s32.totalorder %v262, 1
        %vm271 = vcmp.eq.s32.totalorder %v263, 1
        %vm272 = vcmp.eq.s32.totalorder %v264, 1
        %vm273 = vcmp.eq.s32.totalorder %v265, 1
        %vm274 = vcmp.eq.s32.totalorder %v266, 1
        %vm275 = vcmp.eq.s32.totalorder %v267, 1
        %v276 = vsel %vm268, %v252, 0.0
        %v277 = vsel %vm269, %v253, 0.0
        %v278 = vsel %vm270, %v254, 0.0
        %v279 = vsel %vm271, %v255, 0.0
        %v280 = vsel %vm272, %v256, 0.0
        %v281 = vsel %vm273, %v257, 0.0
        %v282 = vsel %vm274, %v258, 0.0
        %v283 = vsel %vm275, %v259, 0.0
        %v284 = vld [vmem:[%s184] sm:$0x1]
        %vm285 = vcmask 130048
        %v286 = vsel %vm285, %v276, 0.0
        %v287 = vsel %vm285, %v277, 0.0
        %v288 = vadd.f32 %v286, %v287
        %v289 = vsel %vm285, %v278, 0.0
        %v290 = vadd.f32 %v288, %v289
        %v291 = vsel %vm285, %v279, 0.0
        %v292 = vadd.f32 %v290, %v291
        %v293 = vsel %vm285, %v280, 0.0
        %v294 = vadd.f32 %v292, %v293
        %v295 = vsel %vm285, %v281, 0.0
        %v296 = vadd.f32 %v294, %v295
        %v297 = vsel %vm285, %v282, 0.0
        %v298 = vadd.f32 %v296, %v297
        %v299 = vsel %vm285, %v283, 0.0
        %v300 = vadd.f32 %v298, %v299
        %v301 = vrot.slane %v300, 4
        %v302 = vadd.f32 %v300, %v301
        %v303 = vrot.slane %v302, 2
        %v304 = vadd.f32 %v302, %v303
        %v305 = vrot.slane %v304, 1
        %v306 = vadd.f32 %v304, %v305
        %v307 = vadd.f32 %v284, %v306
        %vm308 = vcmask 122880
        %309 = vst.msk [vmem:[%s184] sm:$0x1] %vm308, %v307
        %310 = vxpose.xlu0.b32.start [1/16] %v276, 128
        %311 = vxpose.xlu0.b32.cont [2/16] %v277, 128
        %312 = vxpose.xlu0.b32.cont [3/16] %v278, 128
        %313 = vxpose.xlu0.b32.cont [4/16] %v279, 128
        %314 = vxpose.xlu0.b32.cont [5/16] %v280, 128
        %315 = vxpose.xlu0.b32.cont [6/16] %v281, 128
        %316 = vxpose.xlu0.b32.cont [7/16] %v282, 128
        %317 = vxpose.xlu0.b32.cont [8/16] %v283, 128
        %318 = vxpose.xlu0.b32.cont [9/16] 0.0, 128
        %319 = vxpose.xlu0.b32.cont [10/16] 0.0, 128
        %320 = vxpose.xlu0.b32.cont [11/16] 0.0, 128
        %321 = vxpose.xlu0.b32.cont [12/16] 0.0, 128
        %322 = vxpose.xlu0.b32.cont [13/16] 0.0, 128
        %323 = vxpose.xlu0.b32.cont [14/16] 0.0, 128
        %324 = vxpose.xlu0.b32.cont [15/16] 0.0, 128
        %325 = vxpose.xlu0.b32.end [16/16] 0.0, 128
        %v326 = vpop.trf.xlu0
        %v327 = vpop.trf.xlu0
        %v328 = vpop.trf.xlu0
        %v329 = vpop.trf.xlu0
        %v330 = vpop.trf.xlu0
        %v331 = vpop.trf.xlu0
        %v332 = vpop.trf.xlu0
        %v333 = vpop.trf.xlu0
        %v334 = vpop.trf.xlu0
        %v335 = vpop.trf.xlu0
        %v336 = vpop.trf.xlu0
        %v337 = vpop.trf.xlu0
        %v338 = vpop.trf.xlu0
        %v339 = vpop.trf.xlu0
        %v340 = vpop.trf.xlu0
        %v341 = vpop.trf.xlu0
        %vm342 = vcmask 523264
        %v344 = vsel %vm342, %v326, 0
        %v347 = vsel %vm342, %v327, 0
        %349 = vmatprep.subr.mxu0 0.0
        %350 = vmatpush1.msra.mxu0 0.0
        %351 = vmatprep.subr.mxu0 0.0
        %352 = vmatpush1.msra.mxu0 0.0
        %353 = vmatprep.subr.mxu0 0.0
        %354 = vmatpush1.msra.mxu0 0.0
        %355 = vmatprep.subr.mxu0 0.0
        %356 = vmatpush1.msra.mxu0 0.0
        %357 = vmatprep.subr.mxu0 0.0
        %358 = vmatpush1.msra.mxu0 0.0
        %359 = vmatprep.subr.mxu0 0.0
        %360 = vmatpush1.msra.mxu0 0.0
        %361 = vmatprep.subr.mxu0 0.0
        %362 = vmatpush1.msra.mxu0 0.0
        %363 = vmatprep.subr.mxu0 0.0
        %364 = vmatpush1.msra.mxu0 0.0
        %365 = vmatprep.subr.mxu0 0.0
        %366 = vmatpush1.msra.mxu0 %v283
        %367 = vmatprep.subr.mxu0 0.0
        %368 = vmatpush1.msra.mxu0 %v282
        %369 = vmatprep.subr.mxu0 0.0
        %370 = vmatpush1.msra.mxu0 %v281
        %371 = vmatprep.subr.mxu0 0.0
        %372 = vmatpush1.msra.mxu0 %v280
        %373 = vmatprep.subr.mxu0 0.0
        %374 = vmatpush1.msra.mxu0 %v279
        %375 = vmatprep.subr.mxu0 0.0
        %376 = vmatpush1.msra.mxu0 %v278
        %377 = vmatprep.subr.mxu0 0.0
        %378 = vmatpush1.msra.mxu0 %v277
        %379 = vmatprep.subr.mxu0 0.0
        %380 = vmatpush1.msra.mxu0 %v276
        %381 = vmatprep.subr.mxu0 0.0
        %382 = vmatpush2.msra.mxu0 0.0
        %383 = vmatprep.subr.mxu0 0.0
        %384 = vmatpush2.msra.mxu0 0.0
        %385 = vmatprep.subr.mxu0 0.0
        %386 = vmatpush2.msra.mxu0 0.0
        %387 = vmatprep.subr.mxu0 0.0
        %388 = vmatpush2.msra.mxu0 0.0
        %389 = vmatprep.subr.mxu0 0.0
        %390 = vmatpush2.msra.mxu0 0.0
        %391 = vmatprep.subr.mxu0 0.0
        %392 = vmatpush2.msra.mxu0 0.0
        %393 = vmatprep.subr.mxu0 0.0
        %394 = vmatpush2.msra.mxu0 0.0
        %395 = vmatprep.subr.mxu0 0.0
        %396 = vmatpush2.msra.mxu0 0.0
        %397 = vmatprep.subr.mxu0 0.0
        %398 = vmatpush2.msra.mxu0 0.0
        %399 = vmatprep.subr.mxu0 0.0
        %400 = vmatpush2.msra.mxu0 0.0
        %401 = vmatprep.subr.mxu0 0.0
        %402 = vmatpush2.msra.mxu0 0.0
        %403 = vmatprep.subr.mxu0 0.0
        %404 = vmatpush2.msra.mxu0 0.0
        %405 = vmatprep.subr.mxu0 0.0
        %406 = vmatpush2.msra.mxu0 0.0
        %407 = vmatprep.subr.mxu0 0.0
        %408 = vmatpush2.msra.mxu0 0.0
        %409 = vmatprep.subr.mxu0 0.0
        %410 = vmatpush2.msra.mxu0 0.0
        %411 = vmatprep.subr.mxu0 0.0
        %412 = vmatpush2.msra.mxu0 0.0
        %413 = vmatprep.mubr.f32.mxu0 0.0
        %414 = vmatmul.mubr.f32.gmra.mxu0 %v344
        %v415 = vpop.f32.mrf.mxu0
        %v416 = vadd.f32 0.0, %v415
        %v417 = vpop.f32.mrf.mxu0
        %418 = vmatprep.mubr.f32.mxu0 0.0
        %419 = vmatmul.mubr.f32.gmra.mxu0 %v347
        %v420 = vpop.f32.mrf.mxu0
        %v421 = vadd.f32 0.0, %v420
        %v422 = vpop.f32.mrf.mxu0
        %423 = vdwg.mxu0
        %v424 = vld [vmem:[%s191] sm:$0xff]
        %v425 = vld [vmem:[%s191 + $0x8] sm:$0xff]
        %v426 = vadd.f32 %v424, %v416
        %v427 = vadd.f32 %v425, %v421
        %428 = vst.msk [vmem:[%s191] sm:$0xff] %vm285, %v426
        %429 = vst.msk [vmem:[%s191 + $0x8] sm:$0xff] %vm285, %v427
        %s430 = sand.u32 %s74, 1
        %s431 = scalar_lea.sflag [#allocation3], %s430
        %s432 = sand.u32 %s74, 1
        %s433 = scalar_lea.vmem [#allocation2], %s432
        %s434 = sand.u32 %s100, 1
        %s435 = scalar_lea.sflag [#allocation5], %s434
        %s436 = sand.u32 %s100, 1
        %s437 = smul.addr %s436, 16
        %s438 = scalar_lea.vmem [#allocation4], %s437
        // Predicated region
        $region29: #{tpu_custom_call.1} parent=23 // pred_check
          %p439 = pneg %p84
        $region30: #{tpu_custom_call.1} parent=23 // pred_check_branch
          %441 = sbr.rel (%p439) target = $region32
        $region31: #{tpu_custom_call.1} parent=23 // pred_region
          %s443 = ssub.s32 16, 16
          %444 = vsyncadd %s431, %s443
          %s445 = smul.addr %s24, 16
          %s446 = scalar_lea.hbm %s1, %s445
          %s448 = sshll.u32 %s433, 4
          %s449 = int_to_ptr.vmem [resolvable:$true] %s448
          %451 = dma.vmem_to_hbm [thread:$0]  %s449, 16, %s446, %s431
        $region32: #{tpu_custom_call.1} parent=23 // pred_fallthru
          _
        // Predicated region
        $region33: #{tpu_custom_call.1} parent=23 // pred_check
          %p452 = pneg %p110
        $region34: #{tpu_custom_call.1} parent=23 // pred_check_branch
          %454 = sbr.rel (%p452) target = $region36
        $region35: #{tpu_custom_call.1} parent=23 // pred_region
          %s456 = ssub.s32 256, 256
          %457 = vsyncadd %s435, %s456
          %s458 = smul.addr %s24, 2
          %s459 = smul.addr %s458, 128
          %s460 = scalar_lea.hbm %s2, %s459
          %s461 = sshll.u32 %s438, 4
          %s462 = int_to_ptr.vmem [resolvable:$true] %s461
          %467 = dma.vmem_to_hbm [thread:$0]  %s462, 256, %s460, %s435, 128, 128, 8
        $region36: #{tpu_custom_call.1} parent=23 // pred_fallthru
          _
      $region24: #{tpu_custom_call.1} parent=5 // pred_fallthru
        _
      %p468 = scmp.le.s32.totalorder 2, %s15
      // Predicated region
      $region37: #{tpu_custom_call.1} parent=5 // pred_check
        %p469 = pneg %p468
      $region38: #{tpu_custom_call.1} parent=5 // pred_check_branch
        %471 = sbr.rel (%p469) target = $region40
      $region39: #{tpu_custom_call.1} parent=5 // pred_region
        %s472 = ssub.s32 %s15, 2
        // Predicated region
        $region41: #{tpu_custom_call.1} parent=39 // pred_check
          %p473 = pneg %p90
        $region42: #{tpu_custom_call.1} parent=39 // pred_check_branch
          %475 = sbr.rel (%p473) target = $region44
        $region43: #{tpu_custom_call.1} parent=39 // pred_region
          %s476 = sand.u32 %s75, 1
          %s477 = scalar_lea.sflag [#allocation3], %s476
          %s478 = sand.u32 %s75, 1
          %s479 = scalar_lea.vmem [#allocation2], %s478
          %480 = dma.done %s477, 16
        $region44: #{tpu_custom_call.1} parent=39 // pred_fallthru
          _
        // Predicated region
        $region45: #{tpu_custom_call.1} parent=39 // pred_check
          %p481 = pneg %p116
        $region46: #{tpu_custom_call.1} parent=39 // pred_check_branch
          %483 = sbr.rel (%p481) target = $region48
        $region47: #{tpu_custom_call.1} parent=39 // pred_region
          %s484 = sand.u32 %s101, 1
          %s485 = scalar_lea.sflag [#allocation5], %s484
          %s486 = sand.u32 %s101, 1
          %s487 = smul.addr %s486, 16
          %s488 = scalar_lea.vmem [#allocation4], %s487
          %489 = dma.done %s485, 256
        $region48: #{tpu_custom_call.1} parent=39 // pred_fallthru
          _
      $region40: #{tpu_custom_call.1} parent=5 // pred_fallthru
        _
    $region6: #{tpu_custom_call.1} parent=1 // loop_footer
      %s19 = sadd.s32 1, %s15
    $region7: #{tpu_custom_call.1} parent=1 // loop_footer_branch
      %14 = sbr.rel target = $region3
    $region8: #{tpu_custom_call.1} parent=1 // loop_exit
      _
    %490 = vsyncpa [#allocation3], 1
    %s491 = scalar_lea.sflag [#allocation3], 1
    %492 = vsyncpa %s491, 1
    %493 = vsyncpa [#allocation5], 1
    %s494 = scalar_lea.sflag [#allocation5], 1
    %495 = vsyncpa %s494, 1

</llo_original>
